<compile_context>
chip_gen: v7x
topology: tpu7x:2x2x1
jax: 0.10.0
libtpu: 0.0.40
codegen_flags: <defaults>
</compile_context>

<pallas_src>
import math

import jax
import jax.numpy as jnp
from jax.experimental import pallas as pl
from jax.experimental.pallas import tpu as pltpu


def _cast_clamp_kernel(x_ref, o_ref):
    # Elementwise hot path (VPU): native-dtype load -> f32 cast -> clamp-above.
    o_ref[...] = jnp.minimum(x_ref[...].astype(jnp.float32), jnp.float32(10.0))


_MAX_TILE_BYTES = 4 << 20    # ~4 MiB f32 output tile per grid step
_MIN_SPLIT_BYTES = 1 << 20   # above this, force >=2 grid steps (v7x megacore)


def cast_clamp_int_input_float_max(x: jax.Array) -> jax.Array:
    """Equivalent of CastClampIntInputFloatMax.forward (int input, float max)."""
    orig_shape = x.shape
    n = int(math.prod(orig_shape)) if orig_shape else 1
    if n == 0:
        return jnp.zeros(orig_shape, jnp.float32)

    # ---- pick a 2-D view (no data movement on the common path) --------------
    if x.ndim >= 2:
        cols = orig_shape[-1]
    else:
        cols = n                      # scalars / 1-D arrays become a single row
    rows = n // cols

    pad = 0
    if cols * 32 <= _MAX_TILE_BYTES or n * 4 <= _MAX_TILE_BYTES:
        # Common path: contiguous row-major collapse (free), block over rows,
        # block last dim == full last dim (satisfies the (8,128) rule), ragged
        # boundary block in the row axis is masked by Pallas -> no pad/slice.
        x2d = x if x.ndim == 2 else x.reshape(rows, cols)
    else:
        # Rare fallback: huge 1-D input or an extremely wide last dim that
        # cannot be row-blocked within the VMEM budget -> lane-dense flatten.
        cols = 1024 if n % 1024 == 0 else 128
        rows = pl.cdiv(n, cols)
        pad = rows * cols - n
        flat = x.reshape(-1)
        if pad:
            flat = jnp.pad(flat, (0, pad))
        x2d = flat.reshape(rows, cols)

    # ---- byte-targeted row blocking ------------------------------------------
    max_block_rows = max(1, _MAX_TILE_BYTES // (cols * 4))
    if rows <= max_block_rows:
        block_rows = rows  # single row-block == full dim (no divisibility rule)
        # Ensure >=2 parallel grid steps once the output is >=1 MiB so that
        # v7x's two TensorCores both drive DMA engines.
        if rows >= 16 and rows * cols * 4 >= _MIN_SPLIT_BYTES:
            block_rows = ((-(-rows // 2) + 7) // 8) * 8   # ~rows/2, multiple of 8
    else:
        block_rows = max(8, (max_block_rows // 8) * 8)    # multiple of 8

    grid = (pl.cdiv(rows, block_rows),)

    out2d = pl.pallas_call(
        _cast_clamp_kernel,
        out_shape=jax.ShapeDtypeStruct((rows, cols), jnp.float32),
        grid=grid,
        in_specs=[pl.BlockSpec((block_rows, cols), lambda i: (i, 0))],
        out_specs=pl.BlockSpec((block_rows, cols), lambda i: (i, 0)),
        compiler_params=pltpu.CompilerParams(
            dimension_semantics=("parallel",),
            # Worst case double-buffered footprint: 2 x (in + 4 MiB out) —
            # well within the scoped budget on v5e/v6e and v7x (64 MiB VMEM).
            vmem_limit_bytes=32 << 20,
        ),
    )(x2d)

    if pad:
        return out2d.reshape(-1)[:n].reshape(orig_shape)
    return out2d.reshape(orig_shape)


if __name__ == "__main__":
    key = jax.random.PRNGKey(0)

    # Matches get_example_inputs(): torch.randint(-20, 20, (5, 3)).
    x_small = jax.random.randint(key, (5, 3), -20, 20, dtype=jnp.int32)
    out_small = jax.block_until_ready(cast_clamp_int_input_float_max(x_small))
    ref_small = jnp.minimum(x_small.astype(jnp.float32), 10.0)
    assert out_small.dtype == jnp.float32
    assert out_small.shape == (5, 3)
    assert bool(jnp.array_equal(out_small, ref_small))

    # Larger ragged shape: exercises the multi-step grid with a full-width
    # (non-multiple-of-128) last dim and a masked boundary block — no pad/slice.
    key2 = jax.random.PRNGKey(0)
    x_big = jax.random.randint(key2, (2048, 1100), -20, 20, dtype=jnp.int32)
    out_big = jax.block_until_ready(cast_clamp_int_input_float_max(x_big))
    ref_big = jnp.minimum(x_big.astype(jnp.float32), 10.0)
    assert out_big.dtype == jnp.float32
    assert out_big.shape == x_big.shape
    assert bool(jnp.array_equal(out_big, ref_big))

    print("KERNEL_OK")
</pallas_src>

<mosaic_0001>
module attributes {stable_mosaic.version = 11 : i64} {
  func.func @_cast_clamp_kernel(%arg0: i32, %arg1: memref<5x3xi32, #tpu.memory_space<vmem>>, %arg2: memref<5x3xf32, #tpu.memory_space<vmem>>) attributes {dimension_semantics = [#tpu.dimension_semantics<parallel>], iteration_bounds = array<i64: 1>, scalar_prefetch = 0 : i64, scratch_operands = 0 : i64, tpu.core_type = #tpu.core_type<tc>, window_params = [{transform_indices = @transform_0, window_bounds = array<i64: 5, 3>}, {transform_indices = @transform_1, window_bounds = array<i64: 5, 3>}]} {
    %c0 = arith.constant 0 : index
    %c0_0 = arith.constant 0 : index
    %0 = vector.load %arg1[%c0, %c0_0] : memref<5x3xi32, #tpu.memory_space<vmem>>, vector<5x3xi32>
    %1 = arith.sitofp %0 : vector<5x3xi32> to vector<5x3xf32>
    %cst = arith.constant 1.000000e+01 : f32
    %2 = vector.broadcast %cst : f32 to vector<5x3xf32>
    %3 = arith.minimumf %1, %2 : vector<5x3xf32>
    %c0_1 = arith.constant 0 : index
    %c0_2 = arith.constant 0 : index
    %4 = vector.load %arg2[%c0_1, %c0_2] : memref<5x3xf32, #tpu.memory_space<vmem>>, vector<5x3xf32>
    tpu.vector_store %arg2[%c0_1, %c0_2], %3 {strides = array<i32>} : memref<5x3xf32, #tpu.memory_space<vmem>>, vector<5x3xf32>,
    return
  }
  func.func @transform_0(%arg0: i32) -> (i32, i32) {
    %c0_i32 = arith.constant 0 : i32
    %c0_i32_0 = arith.constant 0 : i32
    return %arg0, %c0_i32 : i32, i32
  }
  func.func @transform_1(%arg0: i32) -> (i32, i32) {
    %c0_i32 = arith.constant 0 : i32
    %c0_i32_0 = arith.constant 0 : i32
    return %arg0, %c0_i32 : i32, i32
  }
}

</mosaic_0001>

<llo_original>
// kernel: tpu_custom_call.1
$region0: #{tpu_custom_call.1}
  #allocation0 [shape = 'u32[]', space=smem, size = 0x4, offset = 0x4, fixed_abs, tag = 'smem constant byte address 0x4 - core index']
  #allocation1 [shape = 'u32[144,128]{1,0:T(1,128)}', space=vmem, size = 0x12000, scoped, tag = 'internal scratch']
  %s0 = inlined_call_operand.vmem [shape: s32[5,3], index: 0, kind: input, shape index: {}]
  %s1 = inlined_call_operand.vmem [shape: f32[5,3], index: 1, kind: output, shape index: {}]
  %s2 = sld [smem:[#allocation0]]
  $region14: #{tpu_custom_call.1} parent=0
    _
  %s4 = ssub.s32 1, %s2
  %s5 = scalar_select 0, %s4, %s2
  // Predicated region
  $region2: #{tpu_custom_call.1} parent=0 // pred_check
    _
  $region3: #{tpu_custom_call.1} parent=0 // pred_check_branch
    %7 = sbr.rel (0) target = $region5
  $region4: #{tpu_custom_call.1} parent=0 // pred_region
    _
  $region5: #{tpu_custom_call.1} parent=0 // pred_fallthru
    _
  %v8 = vld [vmem:[%s0] sm:$0x1f]
  %v9 = vcvt.s32.f32 %v8
  %v10 = vmin.f32 %v9, 10.0
  %vm11 = vcmask 20480
  %12 = vst.msk [vmem:[%s1] sm:$0x1f] %vm11, %v10
  // Predicated region
  $region6: #{tpu_custom_call.1} parent=0 // pred_check
    _
  $region7: #{tpu_custom_call.1} parent=0 // pred_check_branch
    %14 = sbr.rel (0) target = $region9
  $region8: #{tpu_custom_call.1} parent=0 // pred_region
    _
  $region9: #{tpu_custom_call.1} parent=0 // pred_fallthru
    _
  // Predicated region
  $region10: #{tpu_custom_call.1} parent=0 // pred_check
    _
  $region11: #{tpu_custom_call.1} parent=0 // pred_check_branch
    %16 = sbr.rel (0) target = $region13
  $region12: #{tpu_custom_call.1} parent=0 // pred_region
    _
  $region13: #{tpu_custom_call.1} parent=0 // pred_fallthru
    _

</llo_original>
